<compile_context>
chip_gen: v6e
topology: v6e:2x2x1
jax: 0.10.0
libtpu: 0.0.40
codegen_flags: <defaults>
</compile_context>

<pallas_src>
import functools

import jax
import jax.numpy as jnp
import numpy as np
from jax.experimental import pallas as pl
from jax.experimental.pallas import tpu as pltpu


def _dwc_patch_embed_kernel(x_ref, wgt_ref, scale_ref, bias_ref, o_ref, *,
                            k, s, Ho, Wo, C):
    # x_ref    : (1, Hp, Wp, C)    zero-padded NHWC input block (one batch element),
    #                              compute_dtype
    # wgt_ref  : (k, Cout, k*C)    fused depthwise*pointwise weight, one row-group per di,
    #                              transposed (Cout major), compute_dtype
    # scale_ref: (Cout, 1) f32     BN scale  (gamma / sqrt(var + eps))
    # bias_ref : (Cout, 1) f32     BN bias   (beta - mean * scale)
    # o_ref    : (1, Cout, Ho*Wo)  channel-major, lane-dense output block
    if s == 1:
        xv = x_ref[0]                                      # (Hp, Wp, C)

    acc = None
    for di in range(k):                                    # row-group decomposition
        if s == 1:
            taps = [xv[di:di + Ho, dj:dj + Wo, :] for dj in range(k)]
        else:
            # TODO(synk): strided-ds tap reads (stride > 1) are not exercised by the demo
            #             below; validate with interpret mode / lower_as_mlir before
            #             shipping an s > 1 config.
            taps = [x_ref[0, pl.ds(di, Ho, s), pl.ds(dj, Wo, s), :] for dj in range(k)]

        # (Ho, Wo, k*C) -> (Ho*Wo, k*C): cheap leading-dim merge; this is the only
        # materialized im2col slab (k x smaller than the monolithic version).
        g = jnp.concatenate(taps, axis=-1).reshape(Ho * Wo, k * C)

        # NT contraction (contract last dim of both operands), f32 accumulation on the
        # MXU; result is channel-major (Cout, Ho*Wo) so the final store is lane-dense.
        part = jax.lax.dot_general(
            wgt_ref[di], g,
            dimension_numbers=(((1,), (1,)), ((), ())),
            preferred_element_type=jnp.float32)            # (Cout, Ho*Wo)
        acc = part if acc is None else acc + part

    y = acc * scale_ref[...] + bias_ref[...]               # BN affine (f32)
    y = y * jnp.clip(y + 3.0, 0.0, 6.0) * (1.0 / 6.0)      # Hardswish (f32)
    o_ref[0] = y.astype(o_ref.dtype)


def dwc_patch_embed(x_nchw, w_dw, w_pw, bn_gamma, bn_beta, bn_mean, bn_var, *,
                    patch_size, stride, eps=1e-5,
                    compute_dtype=jnp.float32, out_dtype=jnp.float32):
    """Pallas implementation of DWCPatchEmbed.forward. Input/output are NCHW (PyTorch)."""
    N, C, H, W = x_nchw.shape
    k, s = patch_size, stride
    p = (k - 1) // 2
    Cout = w_pw.shape[0]
    Ho = (H + 2 * p - k) // s + 1
    Wo = (W + 2 * p - k) // s + 1
    Hp, Wp = H + 2 * p, W + 2 * p

    # One fused XLA pass: NCHW -> NHWC layout change + cast + zero pad (replaces the
    # previous in-kernel scratch zero + interior copy).
    x = jnp.transpose(x_nchw, (0, 2, 3, 1)).astype(compute_dtype)            # (N, H, W, C)
    if p > 0:
        x = jnp.pad(x, ((0, 0), (p, p), (p, p), (0, 0)))                     # (N, Hp, Wp, C)

    # Fused depthwise*pointwise weight, grouped by kernel row di:
    #   wgt[di, co, dj*C + c] = w_dw[c, di, dj] * w_pw[co, c]
    # Fold is computed in f32; BN scale/bias are applied post-matmul in f32.
    wdw = jnp.transpose(w_dw[:, 0, :, :], (1, 2, 0)).astype(jnp.float32)      # (k, k, C)
    wpw = w_pw[:, :, 0, 0].astype(jnp.float32).T                              # (C, Cout)
    wf = wdw[:, :, :, None] * wpw[None, None, :, :]                           # (k, k, C, Cout)
    wgt = jnp.transpose(wf.reshape(k, k * C, Cout), (0, 2, 1)).astype(compute_dtype)

    inv_std = 1.0 / jnp.sqrt(bn_var.astype(jnp.float32) + eps)
    scale = (bn_gamma.astype(jnp.float32) * inv_std).reshape(Cout, 1)         # (Cout, 1)
    bias = (bn_beta.astype(jnp.float32)
            - bn_mean.astype(jnp.float32) * scale[:, 0]).reshape(Cout, 1)     # (Cout, 1)

    kernel = functools.partial(_dwc_patch_embed_kernel, k=k, s=s, Ho=Ho, Wo=Wo, C=C)

    c_item = jnp.dtype(compute_dtype).itemsize
    o_item = jnp.dtype(out_dtype).itemsize
    cost = pl.CostEstimate(
        flops=2 * N * Ho * Wo * (k * k * C) * Cout,
        transcendentals=0,
        bytes_accessed=(N * Hp * Wp * C * c_item          # padded activations
                        + k * Cout * k * C * c_item       # fused weight
                        + 2 * Cout * 4                    # BN scale + bias
                        + N * Cout * Ho * Wo * o_item))   # output

    out = pl.pallas_call(
        kernel,
        out_shape=jax.ShapeDtypeStruct((N, Cout, Ho * Wo), out_dtype),
        grid=(N,),
        in_specs=[
            pl.BlockSpec((1, Hp, Wp, C), lambda n: (n, 0, 0, 0)),
            pl.BlockSpec((k, Cout, k * C), lambda n: (0, 0, 0)),
            pl.BlockSpec((Cout, 1), lambda n: (0, 0)),
            pl.BlockSpec((Cout, 1), lambda n: (0, 0)),
        ],
        out_specs=pl.BlockSpec((1, Cout, Ho * Wo), lambda n: (n, 0, 0)),
        compiler_params=pltpu.CompilerParams(dimension_semantics=("parallel",)),
        cost_estimate=cost,
    )(x, wgt, scale, bias)

    # Free row-major reshape: (N, Cout, Ho*Wo) -> (N, Cout, Ho, Wo) is already NCHW.
    return out.reshape(N, Cout, Ho, Wo)


def _reference(x_nchw, w_dw, w_pw, gamma, beta, mean, var, *, patch_size, stride, eps=1e-5):
    """Pure-JAX reference (lax conv) matching the PyTorch forward (BN in eval mode)."""
    k, s = patch_size, stride
    p = (k - 1) // 2
    C = x_nchw.shape[1]
    dw = jax.lax.conv_general_dilated(
        x_nchw, w_dw, window_strides=(s, s), padding=[(p, p), (p, p)],
        dimension_numbers=("NCHW", "OIHW", "NCHW"), feature_group_count=C)
    pw = jax.lax.conv_general_dilated(
        dw, w_pw, window_strides=(1, 1), padding=[(0, 0), (0, 0)],
        dimension_numbers=("NCHW", "OIHW", "NCHW"))
    sc = gamma / jnp.sqrt(var + eps)
    y = pw * sc[None, :, None, None] + (beta - mean * sc)[None, :, None, None]
    return y * jnp.clip(y + 3.0, 0.0, 6.0) / 6.0


if __name__ == "__main__":
    # Small shapes consistent with the module: DWCPatchEmbed(in_chans=4, embed_dim=32,
    # patch_size=3, stride=1), input x: (2, 4, 16, 16) NCHW.
    N, C, H, W = 2, 4, 16, 16
    embed_dim, patch_size, stride = 32, 3, 1

    key = jax.random.PRNGKey(0)
    kx, kdw, kpw = jax.random.split(key, 3)

    x = jax.random.normal(kx, (N, C, H, W), dtype=jnp.float32)

    # Deterministic parameter init mimicking the module's __init__:
    #   conv weights ~ N(0, sqrt(2 / (kH*kW*out_ch))); BN gamma=1, beta=0 (running stats 0/1).
    std_dw = float(np.sqrt(2.0 / (patch_size * patch_size * C)))
    std_pw = float(np.sqrt(2.0 / (1 * 1 * embed_dim)))
    w_dw = std_dw * jax.random.normal(kdw, (C, 1, patch_size, patch_size), dtype=jnp.float32)
    w_pw = std_pw * jax.random.normal(kpw, (embed_dim, C, 1, 1), dtype=jnp.float32)
    bn_gamma = jnp.ones((embed_dim,), jnp.float32)
    bn_beta = jnp.zeros((embed_dim,), jnp.float32)
    bn_mean = jnp.zeros((embed_dim,), jnp.float32)
    bn_var = jnp.ones((embed_dim,), jnp.float32)

    ref = _reference(x, w_dw, w_pw, bn_gamma, bn_beta, bn_mean, bn_var,
                     patch_size=patch_size, stride=stride)

    # f32 path (tight numerical check).
    out = dwc_patch_embed(x, w_dw, w_pw, bn_gamma, bn_beta, bn_mean, bn_var,
                          patch_size=patch_size, stride=stride)
    out = jax.block_until_ready(out)
    assert out.shape == (N, embed_dim, H, W)
    np.testing.assert_allclose(np.asarray(out), np.asarray(ref), rtol=1e-4, atol=1e-4)

    # bf16 activations/weights + bf16 output (halved HBM read AND writeback bytes on the
    # memory-bound path); the matmul still accumulates in f32 and the BN affine/Hardswish
    # run in f32 — loose tolerance vs. the f32 reference.
    out_bf16 = dwc_patch_embed(x, w_dw, w_pw, bn_gamma, bn_beta, bn_mean, bn_var,
                               patch_size=patch_size, stride=stride,
                               compute_dtype=jnp.bfloat16, out_dtype=jnp.bfloat16)
    out_bf16 = jax.block_until_ready(out_bf16)
    np.testing.assert_allclose(np.asarray(out_bf16).astype(np.float32), np.asarray(ref),
                               rtol=5e-2, atol=5e-2)

    print("KERNEL_OK")
</pallas_src>

<mosaic_0001>
module attributes {stable_mosaic.version = 11 : i64} {
  func.func @_dwc_patch_embed_kernel(%arg0: i32, %arg1: memref<1x18x18x4xf32, #tpu.memory_space<vmem>>, %arg2: memref<3x32x12xf32, #tpu.memory_space<vmem>>, %arg3: memref<32x1xf32, #tpu.memory_space<vmem>>, %arg4: memref<32x1xf32, #tpu.memory_space<vmem>>, %arg5: memref<1x32x256xf32, #tpu.memory_space<vmem>>) attributes {dimension_semantics = [#tpu.dimension_semantics<parallel>], iteration_bounds = array<i64: 2>, scalar_prefetch = 0 : i64, scratch_operands = 0 : i64, tpu.core_type = #tpu.core_type<tc>, window_params = [{transform_indices = @transform_0, window_bounds = array<i64: 1, 18, 18, 4>}, {pipeline_mode = #tpu.pipeline_mode<synchronous>, transform_indices = @transform_1, window_bounds = array<i64: 3, 32, 12>}, {pipeline_mode = #tpu.pipeline_mode<synchronous>, transform_indices = @transform_2, window_bounds = array<i64: 32, 1>}, {pipeline_mode = #tpu.pipeline_mode<synchronous>, transform_indices = @transform_3, window_bounds = array<i64: 32, 1>}, {transform_indices = @transform_4, window_bounds = array<i64: 1, 32, 256>}]} {
    %c0 = arith.constant 0 : index
    %c0_0 = arith.constant 0 : index
    %c0_1 = arith.constant 0 : index
    %c0_2 = arith.constant 0 : index
    %0 = vector.load %arg1[%c0, %c0_0, %c0_1, %c0_2] : memref<1x18x18x4xf32, #tpu.memory_space<vmem>>, vector<1x18x18x4xf32>
    %1 = vector.shape_cast %0 : vector<1x18x18x4xf32> to vector<18x18x4xf32>
    %2 = vector.extract_strided_slice %1 {offsets = [0, 0, 0], sizes = [16, 16, 4], strides = [1, 1, 1]} : vector<18x18x4xf32> to vector<16x16x4xf32>
    %3 = vector.extract_strided_slice %1 {offsets = [0, 1, 0], sizes = [16, 16, 4], strides = [1, 1, 1]} : vector<18x18x4xf32> to vector<16x16x4xf32>
    %4 = vector.extract_strided_slice %1 {offsets = [0, 2, 0], sizes = [16, 16, 4], strides = [1, 1, 1]} : vector<18x18x4xf32> to vector<16x16x4xf32>
    %5 = tpu.concatenate %2, %3, %4 in 2 : vector<16x16x4xf32>, vector<16x16x4xf32>, vector<16x16x4xf32> -> vector<16x16x12xf32>
    %6 = vector.shape_cast %5 : vector<16x16x12xf32> to vector<256x12xf32>
    %c0_3 = arith.constant 0 : index
    %c0_4 = arith.constant 0 : index
    %c0_5 = arith.constant 0 : index
    %7 = vector.load %arg2[%c0_3, %c0_4, %c0_5] : memref<3x32x12xf32, #tpu.memory_space<vmem>>, vector<1x32x12xf32>
    %8 = vector.shape_cast %7 : vector<1x32x12xf32> to vector<32x12xf32>
    %cst = arith.constant dense<0.000000e+00> : vector<32x256xf32>
    %9 = tpu.matmul %8, %6, %cst {dimension_numbers = #tpu.dot_dimension_numbers<[1], [1], [0], [0], [0, 0, 1, 0], [], []>} : vector<32x12xf32>, vector<256x12xf32>, vector<32x256xf32> -> vector<32x256xf32>
    %10 = vector.extract_strided_slice %1 {offsets = [1, 0, 0], sizes = [16, 16, 4], strides = [1, 1, 1]} : vector<18x18x4xf32> to vector<16x16x4xf32>
    %11 = vector.extract_strided_slice %1 {offsets = [1, 1, 0], sizes = [16, 16, 4], strides = [1, 1, 1]} : vector<18x18x4xf32> to vector<16x16x4xf32>
    %12 = vector.extract_strided_slice %1 {offsets = [1, 2, 0], sizes = [16, 16, 4], strides = [1, 1, 1]} : vector<18x18x4xf32> to vector<16x16x4xf32>
    %13 = tpu.concatenate %10, %11, %12 in 2 : vector<16x16x4xf32>, vector<16x16x4xf32>, vector<16x16x4xf32> -> vector<16x16x12xf32>
    %14 = vector.shape_cast %13 : vector<16x16x12xf32> to vector<256x12xf32>
    %c1 = arith.constant 1 : index
    %c0_6 = arith.constant 0 : index
    %c0_7 = arith.constant 0 : index
    %15 = vector.load %arg2[%c1, %c0_6, %c0_7] : memref<3x32x12xf32, #tpu.memory_space<vmem>>, vector<1x32x12xf32>
    %16 = vector.shape_cast %15 : vector<1x32x12xf32> to vector<32x12xf32>
    %cst_8 = arith.constant dense<0.000000e+00> : vector<32x256xf32>
    %17 = tpu.matmul %16, %14, %cst_8 {dimension_numbers = #tpu.dot_dimension_numbers<[1], [1], [0], [0], [0, 0, 1, 0], [], []>} : vector<32x12xf32>, vector<256x12xf32>, vector<32x256xf32> -> vector<32x256xf32>
    %18 = arith.addf %9, %17 : vector<32x256xf32>
    %19 = vector.extract_strided_slice %1 {offsets = [2, 0, 0], sizes = [16, 16, 4], strides = [1, 1, 1]} : vector<18x18x4xf32> to vector<16x16x4xf32>
    %20 = vector.extract_strided_slice %1 {offsets = [2, 1, 0], sizes = [16, 16, 4], strides = [1, 1, 1]} : vector<18x18x4xf32> to vector<16x16x4xf32>
    %21 = vector.extract_strided_slice %1 {offsets = [2, 2, 0], sizes = [16, 16, 4], strides = [1, 1, 1]} : vector<18x18x4xf32> to vector<16x16x4xf32>
    %22 = tpu.concatenate %19, %20, %21 in 2 : vector<16x16x4xf32>, vector<16x16x4xf32>, vector<16x16x4xf32> -> vector<16x16x12xf32>
    %23 = vector.shape_cast %22 : vector<16x16x12xf32> to vector<256x12xf32>
    %c2 = arith.constant 2 : index
    %c0_9 = arith.constant 0 : index
    %c0_10 = arith.constant 0 : index
    %24 = vector.load %arg2[%c2, %c0_9, %c0_10] : memref<3x32x12xf32, #tpu.memory_space<vmem>>, vector<1x32x12xf32>
    %25 = vector.shape_cast %24 : vector<1x32x12xf32> to vector<32x12xf32>
    %cst_11 = arith.constant dense<0.000000e+00> : vector<32x256xf32>
    %26 = tpu.matmul %25, %23, %cst_11 {dimension_numbers = #tpu.dot_dimension_numbers<[1], [1], [0], [0], [0, 0, 1, 0], [], []>} : vector<32x12xf32>, vector<256x12xf32>, vector<32x256xf32> -> vector<32x256xf32>
    %27 = arith.addf %18, %26 : vector<32x256xf32>
    %c0_12 = arith.constant 0 : index
    %c0_13 = arith.constant 0 : index
    %28 = vector.load %arg3[%c0_12, %c0_13] : memref<32x1xf32, #tpu.memory_space<vmem>>, vector<32x1xf32>
    %29 = vector.broadcast %28 : vector<32x1xf32> to vector<32x256xf32>
    %30 = arith.mulf %27, %29 : vector<32x256xf32>
    %c0_14 = arith.constant 0 : index
    %c0_15 = arith.constant 0 : index
    %31 = vector.load %arg4[%c0_14, %c0_15] : memref<32x1xf32, #tpu.memory_space<vmem>>, vector<32x1xf32>
    %32 = vector.broadcast %31 : vector<32x1xf32> to vector<32x256xf32>
    %33 = arith.addf %30, %32 : vector<32x256xf32>
    %cst_16 = arith.constant 3.000000e+00 : f32
    %34 = vector.broadcast %cst_16 : f32 to vector<32x256xf32>
    %35 = arith.addf %33, %34 : vector<32x256xf32>
    %cst_17 = arith.constant 0.000000e+00 : f32
    %cst_18 = arith.constant 6.000000e+00 : f32
    %36 = vector.broadcast %cst_17 : f32 to vector<32x256xf32>
    %37 = arith.maximumf %36, %35 : vector<32x256xf32>
    %38 = vector.broadcast %cst_18 : f32 to vector<32x256xf32>
    %39 = arith.minimumf %38, %37 : vector<32x256xf32>
    %40 = arith.mulf %33, %39 : vector<32x256xf32>
    %cst_19 = arith.constant 0.166666672 : f32
    %41 = vector.broadcast %cst_19 : f32 to vector<32x256xf32>
    %42 = arith.mulf %40, %41 : vector<32x256xf32>
    %c0_20 = arith.constant 0 : index
    %c0_21 = arith.constant 0 : index
    %c0_22 = arith.constant 0 : index
    %43 = vector.load %arg5[%c0_20, %c0_21, %c0_22] : memref<1x32x256xf32, #tpu.memory_space<vmem>>, vector<1x32x256xf32>
    %44 = vector.shape_cast %43 : vector<1x32x256xf32> to vector<32x256xf32>
    %45 = vector.shape_cast %42 : vector<32x256xf32> to vector<1x32x256xf32>
    tpu.vector_store %arg5[%c0_20, %c0_21, %c0_22], %45 {strides = array<i32>} : memref<1x32x256xf32, #tpu.memory_space<vmem>>, vector<1x32x256xf32>,
    return
  }
  func.func @transform_0(%arg0: i32) -> (i32, i32, i32, i32) {
    %c0_i32 = arith.constant 0 : i32
    %c0_i32_0 = arith.constant 0 : i32
    %c0_i32_1 = arith.constant 0 : i32
    %c0_i32_2 = arith.constant 0 : i32
    return %arg0, %c0_i32, %c0_i32_0, %c0_i32_1 : i32, i32, i32, i32
  }
  func.func @transform_1(%arg0: i32) -> (i32, i32, i32) {
    %c0_i32 = arith.constant 0 : i32
    %c0_i32_0 = arith.constant 0 : i32
    %c0_i32_1 = arith.constant 0 : i32
    %c0_i32_2 = arith.constant 0 : i32
    return %c0_i32, %c0_i32_0, %c0_i32_1 : i32, i32, i32
  }
  func.func @transform_2(%arg0: i32) -> (i32, i32) {
    %c0_i32 = arith.constant 0 : i32
    %c0_i32_0 = arith.constant 0 : i32
    %c0_i32_1 = arith.constant 0 : i32
    return %c0_i32, %c0_i32_0 : i32, i32
  }
  func.func @transform_3(%arg0: i32) -> (i32, i32) {
    %c0_i32 = arith.constant 0 : i32
    %c0_i32_0 = arith.constant 0 : i32
    %c0_i32_1 = arith.constant 0 : i32
    return %c0_i32, %c0_i32_0 : i32, i32
  }
  func.func @transform_4(%arg0: i32) -> (i32, i32, i32) {
    %c0_i32 = arith.constant 0 : i32
    %c0_i32_0 = arith.constant 0 : i32
    %c0_i32_1 = arith.constant 0 : i32
    return %arg0, %c0_i32, %c0_i32_0 : i32, i32, i32
  }
}

</mosaic_0001>

<llo_original>
// kernel: tpu_custom_call.1
$region0: #{tpu_custom_call.1}
  #allocation0 [shape = 'u32[]', space=smem, size = 0x4, offset = 0x4, fixed_abs, tag = 'smem constant byte address 0x4 - core index']
  #allocation1 [shape = 'u32[144,128]{1,0:T(1,128)}', space=vmem, size = 0x12000, scoped, tag = 'internal scratch']
  %s0 = inlined_call_operand.vmem [shape: f32[2,18,18,4], index: 0, kind: input, shape index: {}]
  %s1 = inlined_call_operand.vmem [shape: f32[3,32,12], index: 1, kind: input, shape index: {}]
  %s2 = inlined_call_operand.vmem [shape: f32[32,1], index: 2, kind: input, shape index: {}]
  %s3 = inlined_call_operand.vmem [shape: f32[32,1], index: 3, kind: input, shape index: {}]
  %s4 = inlined_call_operand.hbm [shape: f32[2,32,256], index: 4, kind: output, shape index: {}]
  %s5 = sld [smem:[#allocation0]]
  $region49: #{tpu_custom_call.1} parent=0
    _
  %s7 = ssub.s32 1, %s5
  %s8 = scalar_select 0, %s7, %s5
  $region1: #{tpu_custom_call.1} parent=0
    #allocation2 [shape = 'u8[65536]{0}', space=vmem, size = 0x10000, scoped, tag = 'output window, operand 0']
    #allocation3 [shape = 's32[2]{0}', space=sflag, size = 0x8, scoped, tag = 'scoped memory for tpu_custom_call.1']
    %9 = vsyncpa [#allocation3], 0
    %s10 = scalar_lea.sflag [#allocation3], 1
    %11 = vsyncpa %s10, 0
    loop: start=0, step=1, limit=4
    $region2: #{tpu_custom_call.1} parent=1 // loop_pre_header
      _
    $region3: #{tpu_custom_call.1} parent=1 // loop_header
      %s13 = sphi 0, %s17
      %p14 = scmp.ge.s32.totalorder %s13, 4
      %s23 = sphi 0, %s25
      %s26 = sphi 0, %s23
      %s27 = sphi 0, %s26
      %s43 = sphi 0, %s27
      %s47 = sphi 0, %s47
      %s49 = sphi 0, %s47
      %s50 = sphi 0, %s49
      %s64 = sphi 0, %s50
      %s68 = sphi 0, %s68
      %s70 = sphi 0, %s68
      %s71 = sphi 0, %s70
      %s85 = sphi 0, %s71
      %s89 = sphi 0, %s89
      %s91 = sphi 0, %s89
      %s92 = sphi 0, %s91
      %s106 = sphi 0, %s92
      %s112 = sphi 0, %s114
      %s115 = sphi 0, %s112
      %s116 = sphi 0, %s115
      %s132 = sphi 0, %s116
    $region4: #{tpu_custom_call.1} parent=1 // loop_header_branch
      %16 = sbr.rel (%p14) target = $region8
    $region5: #{tpu_custom_call.1} parent=1 // loop_body
      %s18 = ssub.s32 %s13, 1
      %s19 = ssub.s32 %s13, 2
      %s20 = sadd.s32 %s13, 1
      %s21 = ssub.s32 %s13, %s20
      %p22 = scmp.eq.s32.totalorder %s21, 0
      %s24 = sadd.s32 %s23, 1
      %s25 = scalar_select %p22, %s23, %s24
      %p28 = pneg %p22
      %p29 = scmp.eq.s32.totalorder %s13, 1
      %p30 = por %p28, %p29
      %p31 = scmp.ne.s32.totalorder %s23, %s26
      %p32 = scmp.eq.s32.totalorder %s13, 0
      %p33 = por %p31, %p32
      %p34 = scmp.ne.s32.totalorder %s23, %s26
      %p35 = scmp.eq.s32.totalorder %s18, 1
      %p36 = por %p34, %p35
      %p37 = scmp.ne.s32.totalorder %s26, %s27
      %p38 = scmp.eq.s32.totalorder %s18, 0
      %p39 = por %p37, %p38
      %p40 = scmp.ne.s32.totalorder %s26, %s27
      %p41 = scmp.eq.s32.totalorder %s19, 1
      %p42 = por %p40, %p41
      %p44 = scmp.ne.s32.totalorder %s27, %s43
      %p45 = scmp.eq.s32.totalorder %s19, 0
      %p46 = por %p44, %p45
      %s48 = sadd.s32 %s47, 1
      %p51 = scmp.eq.s32.totalorder %s13, 1
      %p52 = scmp.ne.s32.totalorder %s47, %s49
      %p53 = scmp.eq.s32.totalorder %s13, 0
      %p54 = por %p52, %p53
      %p55 = scmp.ne.s32.totalorder %s47, %s49
      %p56 = scmp.eq.s32.totalorder %s18, 1
      %p57 = por %p55, %p56
      %p58 = scmp.ne.s32.totalorder %s49, %s50
      %p59 = scmp.eq.s32.totalorder %s18, 0
      %p60 = por %p58, %p59
      %p61 = scmp.ne.s32.totalorder %s49, %s50
      %p62 = scmp.eq.s32.totalorder %s19, 1
      %p63 = por %p61, %p62
      %p65 = scmp.ne.s32.totalorder %s50, %s64
      %p66 = scmp.eq.s32.totalorder %s19, 0
      %p67 = por %p65, %p66
      %s69 = sadd.s32 %s68, 1
      %p72 = scmp.eq.s32.totalorder %s13, 1
      %p73 = scmp.ne.s32.totalorder %s68, %s70
      %p74 = scmp.eq.s32.totalorder %s13, 0
      %p75 = por %p73, %p74
      %p76 = scmp.ne.s32.totalorder %s68, %s70
      %p77 = scmp.eq.s32.totalorder %s18, 1
      %p78 = por %p76, %p77
      %p79 = scmp.ne.s32.totalorder %s70, %s71
      %p80 = scmp.eq.s32.totalorder %s18, 0
      %p81 = por %p79, %p80
      %p82 = scmp.ne.s32.totalorder %s70, %s71
      %p83 = scmp.eq.s32.totalorder %s19, 1
      %p84 = por %p82, %p83
      %p86 = scmp.ne.s32.totalorder %s71, %s85
      %p87 = scmp.eq.s32.totalorder %s19, 0
      %p88 = por %p86, %p87
      %s90 = sadd.s32 %s89, 1
      %p93 = scmp.eq.s32.totalorder %s13, 1
      %p94 = scmp.ne.s32.totalorder %s89, %s91
      %p95 = scmp.eq.s32.totalorder %s13, 0
      %p96 = por %p94, %p95
      %p97 = scmp.ne.s32.totalorder %s89, %s91
      %p98 = scmp.eq.s32.totalorder %s18, 1
      %p99 = por %p97, %p98
      %p100 = scmp.ne.s32.totalorder %s91, %s92
      %p101 = scmp.eq.s32.totalorder %s18, 0
      %p102 = por %p100, %p101
      %p103 = scmp.ne.s32.totalorder %s91, %s92
      %p104 = scmp.eq.s32.totalorder %s19, 1
      %p105 = por %p103, %p104
      %p107 = scmp.ne.s32.totalorder %s92, %s106
      %p108 = scmp.eq.s32.totalorder %s19, 0
      %p109 = por %p107, %p108
      %s110 = ssub.s32 %s13, %s20
      %p111 = scmp.eq.s32.totalorder %s110, 0
      %s113 = sadd.s32 %s112, 1
      %s114 = scalar_select %p111, %s112, %s113
      %p117 = pneg %p111
      %p118 = scmp.eq.s32.totalorder %s13, 1
      %p119 = por %p117, %p118
      %p120 = scmp.ne.s32.totalorder %s112, %s115
      %p121 = scmp.eq.s32.totalorder %s13, 0
      %p122 = por %p120, %p121
      %p123 = scmp.ne.s32.totalorder %s112, %s115
      %p124 = scmp.eq.s32.totalorder %s18, 1
      %p125 = por %p123, %p124
      %p126 = scmp.ne.s32.totalorder %s115, %s116
      %p127 = scmp.eq.s32.totalorder %s18, 0
      %p128 = por %p126, %p127
      %p129 = scmp.ne.s32.totalorder %s115, %s116
      %p130 = scmp.eq.s32.totalorder %s19, 1
      %p131 = por %p129, %p130
      %p133 = scmp.ne.s32.totalorder %s116, %s132
      %p134 = scmp.eq.s32.totalorder %s19, 0
      %p135 = por %p133, %p134
      %p136 = scmp.le.s32.totalorder 1, %s13
      %p137 = scmp.lt.s32.totalorder %s13, 3
      %p138 = pnand %p136, %p137
      %p139 = pneg %p138
      // Predicated region
      $region9: #{tpu_custom_call.1} parent=5 // pred_check
        _
      $region10: #{tpu_custom_call.1} parent=5 // pred_check_branch
        %141 = sbr.rel (%p138) target = $region12
      $region11: #{tpu_custom_call.1} parent=5 // pred_region
        %s142 = ssub.s32 %s13, 1
        // Predicated region
        $region13: #{tpu_custom_call.1} parent=11 // pred_check
          %p143 = pneg %p60
        $region14: #{tpu_custom_call.1} parent=11 // pred_check_branch
          %145 = sbr.rel (%p143) target = $region16
        $region15: #{tpu_custom_call.1} parent=11 // pred_region
          _
        $region16: #{tpu_custom_call.1} parent=11 // pred_fallthru
          _
        // Predicated region
        $region17: #{tpu_custom_call.1} parent=11 // pred_check
          %p146 = pneg %p81
        $region18: #{tpu_custom_call.1} parent=11 // pred_check_branch
          %148 = sbr.rel (%p146) target = $region20
        $region19: #{tpu_custom_call.1} parent=11 // pred_region
          _
        $region20: #{tpu_custom_call.1} parent=11 // pred_fallthru
          _
        // Predicated region
        $region21: #{tpu_custom_call.1} parent=11 // pred_check
          %p149 = pneg %p102
        $region22: #{tpu_custom_call.1} parent=11 // pred_check_branch
          %151 = sbr.rel (%p149) target = $region24
        $region23: #{tpu_custom_call.1} parent=11 // pred_region
          _
        $region24: #{tpu_custom_call.1} parent=11 // pred_fallthru
          _
      $region12: #{tpu_custom_call.1} parent=5 // pred_fallthru
        _
      %p152 = scmp.lt.s32.totalorder %s13, 2
      // Predicated region
      $region25: #{tpu_custom_call.1} parent=5 // pred_check
        %p153 = pneg %p152
      $region26: #{tpu_custom_call.1} parent=5 // pred_check_branch
        %155 = sbr.rel (%p153) target = $region28
      $region27: #{tpu_custom_call.1} parent=5 // pred_region
        // Predicated region
        $region29: #{tpu_custom_call.1} parent=27 // pred_check
          %p156 = pneg %p33
        $region30: #{tpu_custom_call.1} parent=27 // pred_check_branch
          %158 = sbr.rel (%p156) target = $region32
        $region31: #{tpu_custom_call.1} parent=27 // pred_region
          %p159 = scmp.lt.s32.totalorder %s13, 1
          %s160 = scalar_select %p159, %s13, 1
          %s161 = smul.addr %s160, 54
          %s162 = smul.addr %s161, 8
          %s163 = scalar_lea.vmem %s0, %s162
        $region32: #{tpu_custom_call.1} parent=27 // pred_fallthru
          _
      $region28: #{tpu_custom_call.1} parent=5 // pred_fallthru
        _
      %p164 = scmp.le.s32.totalorder 1, %s13
      %p165 = scmp.lt.s32.totalorder %s13, 3
      %p166 = pnand %p164, %p165
      %p167 = pneg %p166
      // Predicated region
      $region33: #{tpu_custom_call.1} parent=5 // pred_check
        _
      $region34: #{tpu_custom_call.1} parent=5 // pred_check_branch
        %169 = sbr.rel (%p166) target = $region36
      $region35: #{tpu_custom_call.1} parent=5 // pred_region
        %s170 = ssub.s32 %s13, 1
        %p171 = scmp.lt.s32.totalorder %s18, 1
        %s172 = scalar_select %p171, %s18, 1
        %s173 = smul.addr %s172, 54
        %s174 = smul.addr %s173, 8
        %s175 = scalar_lea.vmem %s0, %s174
        %p176 = pneg %p39
        %p177 = pneg %p36
        %p178 = pneg %p60
        %p179 = pneg %p57
        %p180 = pneg %p81
        %p181 = pneg %p78
        %p182 = pneg %p102
        %p183 = pneg %p99
        %p184 = pneg %p128
        %p185 = pneg %p125
        %s186 = sand.u32 %s115, 1
        %s187 = scalar_lea.sflag [#allocation3], %s186
        %s188 = sand.u32 %s115, 1
        %s189 = smul.addr %s188, 64
        %s190 = scalar_lea.vmem [#allocation2], %s189
        %p191 = scmp.lt.s32.totalorder %s18, 1
        %s192 = scalar_select %p191, %s18, 1
        %s193 = smul.addr %s192, 54
        %s194 = smul.addr %s193, 8
        %s195 = scalar_lea.vmem %s0, %s194
        %v196 = vld [vmem:[%s195] sm:$0xff]
        %v197 = vld [vmem:[%s195 + $0x8] sm:$0xff]
        %v198 = vld [vmem:[%s195 + $0x10] sm:$0x3]
        %v199 = vld [vmem:[%s195 + $0x18] sm:$0xff]
        %v200 = vld [vmem:[%s195 + $0x20] sm:$0xff]
        %v201 = vld [vmem:[%s195 + $0x28] sm:$0x3]
        %v202 = vld [vmem:[%s195 + $0x30] sm:$0xff]
        %v203 = vld [vmem:[%s195 + $0x38] sm:$0xff]
        %v204 = vld [vmem:[%s195 + $0x40] sm:$0x3]
        %v205 = vld [vmem:[%s195 + $0x48] sm:$0xff]
        %v206 = vld [vmem:[%s195 + $0x50] sm:$0xff]
        %v207 = vld [vmem:[%s195 + $0x58] sm:$0x3]
        %v208 = vld [vmem:[%s195 + $0x60] sm:$0xff]
        %v209 = vld [vmem:[%s195 + $0x68] sm:$0xff]
        %v210 = vld [vmem:[%s195 + $0x70] sm:$0x3]
        %v211 = vld [vmem:[%s195 + $0x78] sm:$0xff]
        %v212 = vld [vmem:[%s195 + $0x80] sm:$0xff]
        %v213 = vld [vmem:[%s195 + $0x88] sm:$0x3]
        %v214 = vld [vmem:[%s195 + $0x90] sm:$0xff]
        %v215 = vld [vmem:[%s195 + $0x98] sm:$0xff]
        %v216 = vld [vmem:[%s195 + $0xa0] sm:$0x3]
        %v217 = vld [vmem:[%s195 + $0xa8] sm:$0xff]
        %v218 = vld [vmem:[%s195 + $0xb0] sm:$0xff]
        %v219 = vld [vmem:[%s195 + $0xb8] sm:$0x3]
        %v220 = vld [vmem:[%s195 + $0xc0] sm:$0xff]
        %v221 = vld [vmem:[%s195 + $0xc8] sm:$0xff]
        %v222 = vld [vmem:[%s195 + $0xd0] sm:$0x3]
        %v223 = vld [vmem:[%s195 + $0xd8] sm:$0xff]
        %v224 = vld [vmem:[%s195 + $0xe0] sm:$0xff]
        %v225 = vld [vmem:[%s195 + $0xe8] sm:$0x3]
        %v226 = vld [vmem:[%s195 + $0xf0] sm:$0xff]
        %v227 = vld [vmem:[%s195 + $0xf8] sm:$0xff]
        %v228 = vld [vmem:[%s195 + $0x100] sm:$0x3]
        %v229 = vld [vmem:[%s195 + $0x108] sm:$0xff]
        %v230 = vld [vmem:[%s195 + $0x110] sm:$0xff]
        %v231 = vld [vmem:[%s195 + $0x118] sm:$0x3]
        %v232 = vld [vmem:[%s195 + $0x120] sm:$0xff]
        %v233 = vld [vmem:[%s195 + $0x128] sm:$0xff]
        %v234 = vld [vmem:[%s195 + $0x130] sm:$0x3]
        %v235 = vld [vmem:[%s195 + $0x138] sm:$0xff]
        %v236 = vld [vmem:[%s195 + $0x140] sm:$0xff]
        %v237 = vld [vmem:[%s195 + $0x148] sm:$0x3]
        %v238 = vld [vmem:[%s195 + $0x150] sm:$0xff]
        %v239 = vld [vmem:[%s195 + $0x158] sm:$0xff]
        %v240 = vld [vmem:[%s195 + $0x160] sm:$0x3]
        %v241 = vld [vmem:[%s195 + $0x168] sm:$0xff]
        %v242 = vld [vmem:[%s195 + $0x170] sm:$0xff]
        %v243 = vld [vmem:[%s195 + $0x178] sm:$0x3]
        %v244 = vld [vmem:[%s195 + $0x180] sm:$0xff]
        %v245 = vld [vmem:[%s195 + $0x188] sm:$0xff]
        %v246 = vld [vmem:[%s195 + $0x190] sm:$0x3]
        %v247 = vld [vmem:[%s195 + $0x198] sm:$0xff]
        %v248 = vld [vmem:[%s195 + $0x1a0] sm:$0xff]
        %v249 = vld [vmem:[%s195 + $0x1a8] sm:$0x3]
        %vm298 = vcmask 1046528
        %v299 = vrot.slane %v196, 1
        %v300 = vrot.slane %v197, 1
        %v301 = vsel %vm298, %v299, %v300
        %v302 = vrot.slane %v198, 1
        %v303 = vsel %vm298, %v300, %v302
        %v304 = vrot.slane %v199, 1
        %v305 = vrot.slane %v200, 1
        %v306 = vsel %vm298, %v304, %v305
        %v307 = vrot.slane %v201, 1
        %v308 = vsel %vm298, %v305, %v307
        %v309 = vrot.slane %v202, 1
        %v310 = vrot.slane %v203, 1
        %v311 = vsel %vm298, %v309, %v310
        %v312 = vrot.slane %v204, 1
        %v313 = vsel %vm298, %v310, %v312
        %v314 = vrot.slane %v205, 1
        %v315 = vrot.slane %v206, 1
        %v316 = vsel %vm298, %v314, %v315
        %v317 = vrot.slane %v207, 1
        %v318 = vsel %vm298, %v315, %v317
        %v319 = vrot.slane %v208, 1
        %v320 = vrot.slane %v209, 1
        %v321 = vsel %vm298, %v319, %v320
        %v322 = vrot.slane %v210, 1
        %v323 = vsel %vm298, %v320, %v322
        %v324 = vrot.slane %v211, 1
        %v325 = vrot.slane %v212, 1
        %v326 = vsel %vm298, %v324, %v325
        %v327 = vrot.slane %v213, 1
        %v328 = vsel %vm298, %v325, %v327
        %v329 = vrot.slane %v214, 1
        %v330 = vrot.slane %v215, 1
        %v331 = vsel %vm298, %v329, %v330
        %v332 = vrot.slane %v216, 1
        %v333 = vsel %vm298, %v330, %v332
        %v334 = vrot.slane %v217, 1
        %v335 = vrot.slane %v218, 1
        %v336 = vsel %vm298, %v334, %v335
        %v337 = vrot.slane %v219, 1
        %v338 = vsel %vm298, %v335, %v337
        %v339 = vrot.slane %v220, 1
        %v340 = vrot.slane %v221, 1
        %v341 = vsel %vm298, %v339, %v340
        %v342 = vrot.slane %v222, 1
        %v343 = vsel %vm298, %v340, %v342
        %v344 = vrot.slane %v223, 1
        %v345 = vrot.slane %v224, 1
        %v346 = vsel %vm298, %v344, %v345
        %v347 = vrot.slane %v225, 1
        %v348 = vsel %vm298, %v345, %v347
        %v349 = vrot.slane %v226, 1
        %v350 = vrot.slane %v227, 1
        %v351 = vsel %vm298, %v349, %v350
        %v352 = vrot.slane %v228, 1
        %v353 = vsel %vm298, %v350, %v352
        %v354 = vrot.slane %v229, 1
        %v355 = vrot.slane %v230, 1
        %v356 = vsel %vm298, %v354, %v355
        %v357 = vrot.slane %v231, 1
        %v358 = vsel %vm298, %v355, %v357
        %v359 = vrot.slane %v232, 1
        %v360 = vrot.slane %v233, 1
        %v361 = vsel %vm298, %v359, %v360
        %v362 = vrot.slane %v234, 1
        %v363 = vsel %vm298, %v360, %v362
        %v364 = vrot.slane %v235, 1
        %v365 = vrot.slane %v236, 1
        %v366 = vsel %vm298, %v364, %v365
        %v367 = vrot.slane %v237, 1
        %v368 = vsel %vm298, %v365, %v367
        %v369 = vrot.slane %v238, 1
        %v370 = vrot.slane %v239, 1
        %v371 = vsel %vm298, %v369, %v370
        %v372 = vrot.slane %v240, 1
        %v373 = vsel %vm298, %v370, %v372
        %v374 = vrot.slane %v241, 1
        %v375 = vrot.slane %v242, 1
        %v376 = vsel %vm298, %v374, %v375
        %v377 = vrot.slane %v243, 1
        %v378 = vsel %vm298, %v375, %v377
        %379 = vrot.lane.b32.xlu0 %v301, 4
        %v380 = vpop.permute.xlu0 %379
        %381 = vrot.lane.b32.xlu0 %v303, 4
        %v382 = vpop.permute.xlu0 %381
        %383 = vrot.lane.b32.xlu0 %v306, 4
        %v384 = vpop.permute.xlu0 %383
        %385 = vrot.lane.b32.xlu0 %v308, 4
        %v386 = vpop.permute.xlu0 %385
        %387 = vrot.lane.b32.xlu0 %v311, 4
        %v388 = vpop.permute.xlu0 %387
        %389 = vrot.lane.b32.xlu0 %v313, 4
        %v390 = vpop.permute.xlu0 %389
        %391 = vrot.lane.b32.xlu0 %v316, 4
        %v392 = vpop.permute.xlu0 %391
        %393 = vrot.lane.b32.xlu0 %v318, 4
        %v394 = vpop.permute.xlu0 %393
        %395 = vrot.lane.b32.xlu0 %v321, 4
        %v396 = vpop.permute.xlu0 %395
        %397 = vrot.lane.b32.xlu0 %v323, 4
        %v398 = vpop.permute.xlu0 %397
        %399 = vrot.lane.b32.xlu0 %v326, 4
        %v400 = vpop.permute.xlu0 %399
        %401 = vrot.lane.b32.xlu0 %v328, 4
        %v402 = vpop.permute.xlu0 %401
        %403 = vrot.lane.b32.xlu0 %v331, 4
        %v404 = vpop.permute.xlu0 %403
        %405 = vrot.lane.b32.xlu0 %v333, 4
        %v406 = vpop.permute.xlu0 %405
        %407 = vrot.lane.b32.xlu0 %v336, 4
        %v408 = vpop.permute.xlu0 %407
        %409 = vrot.lane.b32.xlu0 %v338, 4
        %v410 = vpop.permute.xlu0 %409
        %411 = vrot.lane.b32.xlu0 %v341, 4
        %v412 = vpop.permute.xlu0 %411
        %413 = vrot.lane.b32.xlu0 %v343, 4
        %v414 = vpop.permute.xlu0 %413
        %415 = vrot.lane.b32.xlu0 %v346, 4
        %v416 = vpop.permute.xlu0 %415
        %417 = vrot.lane.b32.xlu0 %v348, 4
        %v418 = vpop.permute.xlu0 %417
        %419 = vrot.lane.b32.xlu0 %v351, 4
        %v420 = vpop.permute.xlu0 %419
        %421 = vrot.lane.b32.xlu0 %v353, 4
        %v422 = vpop.permute.xlu0 %421
        %423 = vrot.lane.b32.xlu0 %v356, 4
        %v424 = vpop.permute.xlu0 %423
        %425 = vrot.lane.b32.xlu0 %v358, 4
        %v426 = vpop.permute.xlu0 %425
        %427 = vrot.lane.b32.xlu0 %v361, 4
        %v428 = vpop.permute.xlu0 %427
        %429 = vrot.lane.b32.xlu0 %v363, 4
        %v430 = vpop.permute.xlu0 %429
        %431 = vrot.lane.b32.xlu0 %v366, 4
        %v432 = vpop.permute.xlu0 %431
        %433 = vrot.lane.b32.xlu0 %v368, 4
        %v434 = vpop.permute.xlu0 %433
        %435 = vrot.lane.b32.xlu0 %v371, 4
        %v436 = vpop.permute.xlu0 %435
        %437 = vrot.lane.b32.xlu0 %v373, 4
        %v438 = vpop.permute.xlu0 %437
        %439 = vrot.lane.b32.xlu0 %v376, 4
        %v440 = vpop.permute.xlu0 %439
        %441 = vrot.lane.b32.xlu0 %v378, 4
        %v442 = vpop.permute.xlu0 %441
        %vm475 = vcmask 1045504
        %v476 = vrot.slane %v196, 2
        %v477 = vrot.slane %v197, 2
        %v478 = vsel %vm475, %v476, %v477
        %v479 = vrot.slane %v198, 2
        %v480 = vsel %vm475, %v477, %v479
        %v481 = vrot.slane %v199, 2
        %v482 = vrot.slane %v200, 2
        %v483 = vsel %vm475, %v481, %v482
        %v484 = vrot.slane %v201, 2
        %v485 = vsel %vm475, %v482, %v484
        %v486 = vrot.slane %v202, 2
        %v487 = vrot.slane %v203, 2
        %v488 = vsel %vm475, %v486, %v487
        %v489 = vrot.slane %v204, 2
        %v490 = vsel %vm475, %v487, %v489
        %v491 = vrot.slane %v205, 2
        %v492 = vrot.slane %v206, 2
        %v493 = vsel %vm475, %v491, %v492
        %v494 = vrot.slane %v207, 2
        %v495 = vsel %vm475, %v492, %v494
        %v496 = vrot.slane %v208, 2
        %v497 = vrot.slane %v209, 2
        %v498 = vsel %vm475, %v496, %v497
        %v499 = vrot.slane %v210, 2
        %v500 = vsel %vm475, %v497, %v499
        %v501 = vrot.slane %v211, 2
        %v502 = vrot.slane %v212, 2
        %v503 = vsel %vm475, %v501, %v502
        %v504 = vrot.slane %v213, 2
        %v505 = vsel %vm475, %v502, %v504
        %v506 = vrot.slane %v214, 2
        %v507 = vrot.slane %v215, 2
        %v508 = vsel %vm475, %v506, %v507
        %v509 = vrot.slane %v216, 2
        %v510 = vsel %vm475, %v507, %v509
        %v511 = vrot.slane %v217, 2
        %v512 = vrot.slane %v218, 2
        %v513 = vsel %vm475, %v511, %v512
        %v514 = vrot.slane %v219, 2
        %v515 = vsel %vm475, %v512, %v514
        %v516 = vrot.slane %v220, 2
        %v517 = vrot.slane %v221, 2
        %v518 = vsel %vm475, %v516, %v517
        %v519 = vrot.slane %v222, 2
        %v520 = vsel %vm475, %v517, %v519
        %v521 = vrot.slane %v223, 2
        %v522 = vrot.slane %v224, 2
        %v523 = vsel %vm475, %v521, %v522
        %v524 = vrot.slane %v225, 2
        %v525 = vsel %vm475, %v522, %v524
        %v526 = vrot.slane %v226, 2
        %v527 = vrot.slane %v227, 2
        %v528 = vsel %vm475, %v526, %v527
        %v529 = vrot.slane %v228, 2
        %v530 = vsel %vm475, %v527, %v529
        %v531 = vrot.slane %v229, 2
        %v532 = vrot.slane %v230, 2
        %v533 = vsel %vm475, %v531, %v532
        %v534 = vrot.slane %v231, 2
        %v535 = vsel %vm475, %v532, %v534
        %v536 = vrot.slane %v232, 2
        %v537 = vrot.slane %v233, 2
        %v538 = vsel %vm475, %v536, %v537
        %v539 = vrot.slane %v234, 2
        %v540 = vsel %vm475, %v537, %v539
        %v541 = vrot.slane %v235, 2
        %v542 = vrot.slane %v236, 2
        %v543 = vsel %vm475, %v541, %v542
        %v544 = vrot.slane %v237, 2
        %v545 = vsel %vm475, %v542, %v544
        %v546 = vrot.slane %v238, 2
        %v547 = vrot.slane %v239, 2
        %v548 = vsel %vm475, %v546, %v547
        %v549 = vrot.slane %v240, 2
        %v550 = vsel %vm475, %v547, %v549
        %v551 = vrot.slane %v241, 2
        %v552 = vrot.slane %v242, 2
        %v553 = vsel %vm475, %v551, %v552
        %v554 = vrot.slane %v243, 2
        %v555 = vsel %vm475, %v552, %v554
        %556 = vrot.lane.b32.xlu0 %v478, 8
        %v557 = vpop.permute.xlu0 %556
        %558 = vrot.lane.b32.xlu0 %v480, 8
        %v559 = vpop.permute.xlu0 %558
        %560 = vrot.lane.b32.xlu0 %v483, 8
        %v561 = vpop.permute.xlu0 %560
        %562 = vrot.lane.b32.xlu0 %v485, 8
        %v563 = vpop.permute.xlu0 %562
        %564 = vrot.lane.b32.xlu0 %v488, 8
        %v565 = vpop.permute.xlu0 %564
        %566 = vrot.lane.b32.xlu0 %v490, 8
        %v567 = vpop.permute.xlu0 %566
        %568 = vrot.lane.b32.xlu0 %v493, 8
        %v569 = vpop.permute.xlu0 %568
        %570 = vrot.lane.b32.xlu0 %v495, 8
        %v571 = vpop.permute.xlu0 %570
        %572 = vrot.lane.b32.xlu0 %v498, 8
        %v573 = vpop.permute.xlu0 %572
        %574 = vrot.lane.b32.xlu0 %v500, 8
        %v575 = vpop.permute.xlu0 %574
        %576 = vrot.lane.b32.xlu0 %v503, 8
        %v577 = vpop.permute.xlu0 %576
        %578 = vrot.lane.b32.xlu0 %v505, 8
        %v579 = vpop.permute.xlu0 %578
        %580 = vrot.lane.b32.xlu0 %v508, 8
        %v581 = vpop.permute.xlu0 %580
        %582 = vrot.lane.b32.xlu0 %v510, 8
        %v583 = vpop.permute.xlu0 %582
        %584 = vrot.lane.b32.xlu0 %v513, 8
        %v585 = vpop.permute.xlu0 %584
        %586 = vrot.lane.b32.xlu0 %v515, 8
        %v587 = vpop.permute.xlu0 %586
        %588 = vrot.lane.b32.xlu0 %v518, 8
        %v589 = vpop.permute.xlu0 %588
        %590 = vrot.lane.b32.xlu0 %v520, 8
        %v591 = vpop.permute.xlu0 %590
        %592 = vrot.lane.b32.xlu0 %v523, 8
        %v593 = vpop.permute.xlu0 %592
        %594 = vrot.lane.b32.xlu0 %v525, 8
        %v595 = vpop.permute.xlu0 %594
        %596 = vrot.lane.b32.xlu0 %v528, 8
        %v597 = vpop.permute.xlu0 %596
        %598 = vrot.lane.b32.xlu0 %v530, 8
        %v599 = vpop.permute.xlu0 %598
        %600 = vrot.lane.b32.xlu0 %v533, 8
        %v601 = vpop.permute.xlu0 %600
        %602 = vrot.lane.b32.xlu0 %v535, 8
        %v603 = vpop.permute.xlu0 %602
        %604 = vrot.lane.b32.xlu0 %v538, 8
        %v605 = vpop.permute.xlu0 %604
        %606 = vrot.lane.b32.xlu0 %v540, 8
        %v607 = vpop.permute.xlu0 %606
        %608 = vrot.lane.b32.xlu0 %v543, 8
        %v609 = vpop.permute.xlu0 %608
        %610 = vrot.lane.b32.xlu0 %v545, 8
        %v611 = vpop.permute.xlu0 %610
        %612 = vrot.lane.b32.xlu0 %v548, 8
        %v613 = vpop.permute.xlu0 %612
        %614 = vrot.lane.b32.xlu0 %v550, 8
        %v615 = vpop.permute.xlu0 %614
        %616 = vrot.lane.b32.xlu0 %v553, 8
        %v617 = vpop.permute.xlu0 %616
        %618 = vrot.lane.b32.xlu0 %v555, 8
        %v619 = vpop.permute.xlu0 %618
        %vm652 = vcmask 31744
        %v653 = vsel %vm652, %v196, %v380
        %v654 = vsel %vm652, %v197, %v382
        %v655 = vsel %vm652, %v199, %v384
        %v656 = vsel %vm652, %v200, %v386
        %v657 = vsel %vm652, %v202, %v388
        %v658 = vsel %vm652, %v203, %v390
        %v659 = vsel %vm652, %v205, %v392
        %v660 = vsel %vm652, %v206, %v394
        %v661 = vsel %vm652, %v208, %v396
        %v662 = vsel %vm652, %v209, %v398
        %v663 = vsel %vm652, %v211, %v400
        %v664 = vsel %vm652, %v212, %v402
        %v665 = vsel %vm652, %v214, %v404
        %v666 = vsel %vm652, %v215, %v406
        %v667 = vsel %vm652, %v217, %v408
        %v668 = vsel %vm652, %v218, %v410
        %v669 = vsel %vm652, %v220, %v412
        %v670 = vsel %vm652, %v221, %v414
        %v671 = vsel %vm652, %v223, %v416
        %v672 = vsel %vm652, %v224, %v418
        %v673 = vsel %vm652, %v226, %v420
        %v674 = vsel %vm652, %v227, %v422
        %v675 = vsel %vm652, %v229, %v424
        %v676 = vsel %vm652, %v230, %v426
        %v677 = vsel %vm652, %v232, %v428
        %v678 = vsel %vm652, %v233, %v430
        %v679 = vsel %vm652, %v235, %v432
        %v680 = vsel %vm652, %v236, %v434
        %v681 = vsel %vm652, %v238, %v436
        %v682 = vsel %vm652, %v239, %v438
        %v683 = vsel %vm652, %v241, %v440
        %v684 = vsel %vm652, %v242, %v442
        %vm685 = vcmask 64512
        %v686 = vsel %vm685, %v653, %v557
        %v687 = vsel %vm685, %v654, %v559
        %v688 = vsel %vm685, %v655, %v561
        %v689 = vsel %vm685, %v656, %v563
        %v690 = vsel %vm685, %v657, %v565
        %v691 = vsel %vm685, %v658, %v567
        %v692 = vsel %vm685, %v659, %v569
        %v693 = vsel %vm685, %v660, %v571
        %v694 = vsel %vm685, %v661, %v573
        %v695 = vsel %vm685, %v662, %v575
        %v696 = vsel %vm685, %v663, %v577
        %v697 = vsel %vm685, %v664, %v579
        %v698 = vsel %vm685, %v665, %v581
        %v699 = vsel %vm685, %v666, %v583
        %v700 = vsel %vm685, %v667, %v585
        %v701 = vsel %vm685, %v668, %v587
        %v702 = vsel %vm685, %v669, %v589
        %v703 = vsel %vm685, %v670, %v591
        %v704 = vsel %vm685, %v671, %v593
        %v705 = vsel %vm685, %v672, %v595
        %v706 = vsel %vm685, %v673, %v597
        %v707 = vsel %vm685, %v674, %v599
        %v708 = vsel %vm685, %v675, %v601
        %v709 = vsel %vm685, %v676, %v603
        %v710 = vsel %vm685, %v677, %v605
        %v711 = vsel %vm685, %v678, %v607
        %v712 = vsel %vm685, %v679, %v609
        %v713 = vsel %vm685, %v680, %v611
        %v714 = vsel %vm685, %v681, %v613
        %v715 = vsel %vm685, %v682, %v615
        %v716 = vsel %vm685, %v683, %v617
        %v717 = vsel %vm685, %v684, %v619
        %v718 = vld [vmem:[%s1] sm:$0xff]
        %v719 = vld [vmem:[%s1 + $0x8] sm:$0xff]
        %v720 = vld [vmem:[%s1 + $0x10] sm:$0xff]
        %v721 = vld [vmem:[%s1 + $0x18] sm:$0xff]
        %v725 = vrot.slane %v244, 1
        %v726 = vrot.slane %v245, 1
        %v727 = vsel %vm298, %v725, %v726
        %v728 = vrot.slane %v246, 1
        %v729 = vsel %vm298, %v726, %v728
        %730 = vrot.lane.b32.xlu0 %v727, 4
        %v731 = vpop.permute.xlu0 %730
        %732 = vrot.lane.b32.xlu0 %v729, 4
        %v733 = vpop.permute.xlu0 %732
        %v736 = vrot.slane %v244, 2
        %v737 = vrot.slane %v245, 2
        %v738 = vsel %vm475, %v736, %v737
        %v739 = vrot.slane %v246, 2
        %v740 = vsel %vm475, %v737, %v739
        %741 = vrot.lane.b32.xlu0 %v738, 8
        %v742 = vpop.permute.xlu0 %741
        %743 = vrot.lane.b32.xlu0 %v740, 8
        %v744 = vpop.permute.xlu0 %743
        %v747 = vsel %vm652, %v244, %v731
        %v748 = vsel %vm652, %v245, %v733
        %v749 = vsel %vm685, %v747, %v742
        %v750 = vsel %vm685, %v748, %v744
        %s751 = scalar_lea.vmem %s1, 32
        %v752 = vld [vmem:[%s751] sm:$0xff]
        %v753 = vld [vmem:[%s751 + $0x8] sm:$0xff]
        %v754 = vld [vmem:[%s751 + $0x10] sm:$0xff]
        %v755 = vld [vmem:[%s751 + $0x18] sm:$0xff]
        %vm756 = vcmask 97280
        %v758 = vsel %vm756, %v752, 0
        %v761 = vsel %vm756, %v753, 0
        %v764 = vsel %vm756, %v754, 0
        %v767 = vsel %vm756, %v755, 0
        %v770 = vsel %vm756, %v688, 0
        %v773 = vsel %vm756, %v689, 0
        %v776 = vsel %vm756, %v690, 0
        %v779 = vsel %vm756, %v691, 0
        %v782 = vsel %vm756, %v692, 0
        %v785 = vsel %vm756, %v693, 0
        %v788 = vsel %vm756, %v694, 0
        %v791 = vsel %vm756, %v695, 0
        %v794 = vsel %vm756, %v696, 0
        %v797 = vsel %vm756, %v697, 0
        %v800 = vsel %vm756, %v698, 0
        %v803 = vsel %vm756, %v699, 0
        %v806 = vsel %vm756, %v700, 0
        %v809 = vsel %vm756, %v701, 0
        %v812 = vsel %vm756, %v702, 0
        %v815 = vsel %vm756, %v703, 0
        %v818 = vsel %vm756, %v704, 0
        %v821 = vsel %vm756, %v705, 0
        %v824 = vsel %vm756, %v706, 0
        %v827 = vsel %vm756, %v707, 0
        %v830 = vsel %vm756, %v708, 0
        %v833 = vsel %vm756, %v709, 0
        %v836 = vsel %vm756, %v710, 0
        %v839 = vsel %vm756, %v711, 0
        %v842 = vsel %vm756, %v712, 0
        %v845 = vsel %vm756, %v713, 0
        %v848 = vsel %vm756, %v714, 0
        %v851 = vsel %vm756, %v715, 0
        %v854 = vsel %vm756, %v716, 0
        %v857 = vsel %vm756, %v717, 0
        %v860 = vsel %vm756, %v749, 0
        %v863 = vsel %vm756, %v750, 0
        %865 = vmatprep.subr.mxu0 0.0
        %866 = vmatpush1.xpose.msra.mxu0 %v815
        %867 = vmatprep.subr.mxu0 0.0
        %868 = vmatpush1.xpose.msra.mxu0 %v812
        %869 = vmatprep.subr.mxu0 0.0
        %870 = vmatpush1.xpose.msra.mxu0 %v809
        %871 = vmatprep.subr.mxu0 0.0
        %872 = vmatpush1.xpose.msra.mxu0 %v806
        %873 = vmatprep.subr.mxu0 0.0
        %874 = vmatpush1.xpose.msra.mxu0 %v803
        %875 = vmatprep.subr.mxu0 0.0
        %876 = vmatpush1.xpose.msra.mxu0 %v800
        %877 = vmatprep.subr.mxu0 0.0
        %878 = vmatpush1.xpose.msra.mxu0 %v797
        %879 = vmatprep.subr.mxu0 0.0
        %880 = vmatpush1.xpose.msra.mxu0 %v794
        %881 = vmatprep.subr.mxu0 0.0
        %882 = vmatpush1.xpose.msra.mxu0 %v791
        %883 = vmatprep.subr.mxu0 0.0
        %884 = vmatpush1.xpose.msra.mxu0 %v788
        %885 = vmatprep.subr.mxu0 0.0
        %886 = vmatpush1.xpose.msra.mxu0 %v785
        %887 = vmatprep.subr.mxu0 0.0
        %888 = vmatpush1.xpose.msra.mxu0 %v782
        %889 = vmatprep.subr.mxu0 0.0
        %890 = vmatpush1.xpose.msra.mxu0 %v779
        %891 = vmatprep.subr.mxu0 0.0
        %892 = vmatpush1.xpose.msra.mxu0 %v776
        %893 = vmatprep.subr.mxu0 0.0
        %894 = vmatpush1.xpose.msra.mxu0 %v773
        %895 = vmatprep.subr.mxu0 0.0
        %896 = vmatpush1.xpose.msra.mxu0 %v770
        %897 = vmatprep.subr.mxu0 0.0
        %898 = vmatpush2.xpose.msra.mxu0 %v863
        %899 = vmatprep.subr.mxu0 0.0
        %900 = vmatpush2.xpose.msra.mxu0 %v860
        %901 = vmatprep.subr.mxu0 0.0
        %902 = vmatpush2.xpose.msra.mxu0 %v857
        %903 = vmatprep.subr.mxu0 0.0
        %904 = vmatpush2.xpose.msra.mxu0 %v854
        %905 = vmatprep.subr.mxu0 0.0
        %906 = vmatpush2.xpose.msra.mxu0 %v851
        %907 = vmatprep.subr.mxu0 0.0
        %908 = vmatpush2.xpose.msra.mxu0 %v848
        %909 = vmatprep.subr.mxu0 0.0
        %910 = vmatpush2.xpose.msra.mxu0 %v845
        %911 = vmatprep.subr.mxu0 0.0
        %912 = vmatpush2.xpose.msra.mxu0 %v842
        %913 = vmatprep.subr.mxu0 0.0
        %914 = vmatpush2.xpose.msra.mxu0 %v839
        %915 = vmatprep.subr.mxu0 0.0
        %916 = vmatpush2.xpose.msra.mxu0 %v836
        %917 = vmatprep.subr.mxu0 0.0
        %918 = vmatpush2.xpose.msra.mxu0 %v833
        %919 = vmatprep.subr.mxu0 0.0
        %920 = vmatpush2.xpose.msra.mxu0 %v830
        %921 = vmatprep.subr.mxu0 0.0
        %922 = vmatpush2.xpose.msra.mxu0 %v827
        %923 = vmatprep.subr.mxu0 0.0
        %924 = vmatpush2.xpose.msra.mxu0 %v824
        %925 = vmatprep.subr.mxu0 0.0
        %926 = vmatpush2.xpose.msra.mxu0 %v821
        %927 = vmatprep.subr.mxu0 0.0
        %928 = vmatpush2.xpose.msra.mxu0 %v818
        %929 = vmatprep.mubr.f32.mxu0 0.0
        %930 = vmatmul.mubr.f32.gmra.mxu0 %v758
        %v931 = vpop.f32.mrf.mxu0
        %v932 = vadd.f32 0.0, %v931
        %v933 = vpop.f32.mrf.mxu0
        %v934 = vadd.f32 0.0, %v933
        %935 = vmatprep.mubr.f32.mxu0 0.0
        %936 = vmatmul.mubr.f32.gmra.mxu0 %v761
        %v937 = vpop.f32.mrf.mxu0
        %v938 = vadd.f32 0.0, %v937
        %v939 = vpop.f32.mrf.mxu0
        %v940 = vadd.f32 0.0, %v939
        %941 = vmatprep.mubr.f32.mxu0 0.0
        %942 = vmatmul.mubr.f32.gmra.mxu0 %v764
        %v943 = vpop.f32.mrf.mxu0
        %v944 = vadd.f32 0.0, %v943
        %v945 = vpop.f32.mrf.mxu0
        %v946 = vadd.f32 0.0, %v945
        %947 = vmatprep.mubr.f32.mxu0 0.0
        %948 = vmatmul.mubr.f32.gmra.mxu0 %v767
        %v949 = vpop.f32.mrf.mxu0
        %v950 = vadd.f32 0.0, %v949
        %v951 = vpop.f32.mrf.mxu0
        %v952 = vadd.f32 0.0, %v951
        %953 = vdwg.mxu0
        %v955 = vsel %vm756, %v718, 0
        %v958 = vsel %vm756, %v719, 0
        %v961 = vsel %vm756, %v720, 0
        %v964 = vsel %vm756, %v721, 0
        %v967 = vsel %vm756, %v686, 0
        %v970 = vsel %vm756, %v687, 0
        %972 = vmatprep.subr.mxu0 0.0
        %973 = vmatpush1.xpose.msra.mxu0 %v809
        %974 = vmatprep.subr.mxu0 0.0
        %975 = vmatpush1.xpose.msra.mxu0 %v806
        %976 = vmatprep.subr.mxu0 0.0
        %977 = vmatpush1.xpose.msra.mxu0 %v803
        %978 = vmatprep.subr.mxu0 0.0
        %979 = vmatpush1.xpose.msra.mxu0 %v800
        %980 = vmatprep.subr.mxu0 0.0
        %981 = vmatpush1.xpose.msra.mxu0 %v797
        %982 = vmatprep.subr.mxu0 0.0
        %983 = vmatpush1.xpose.msra.mxu0 %v794
        %984 = vmatprep.subr.mxu0 0.0
        %985 = vmatpush1.xpose.msra.mxu0 %v791
        %986 = vmatprep.subr.mxu0 0.0
        %987 = vmatpush1.xpose.msra.mxu0 %v788
        %988 = vmatprep.subr.mxu0 0.0
        %989 = vmatpush1.xpose.msra.mxu0 %v785
        %990 = vmatprep.subr.mxu0 0.0
        %991 = vmatpush1.xpose.msra.mxu0 %v782
        %992 = vmatprep.subr.mxu0 0.0
        %993 = vmatpush1.xpose.msra.mxu0 %v779
        %994 = vmatprep.subr.mxu0 0.0
        %995 = vmatpush1.xpose.msra.mxu0 %v776
        %996 = vmatprep.subr.mxu0 0.0
        %997 = vmatpush1.xpose.msra.mxu0 %v773
        %998 = vmatprep.subr.mxu0 0.0
        %999 = vmatpush1.xpose.msra.mxu0 %v770
        %1000 = vmatprep.subr.mxu0 0.0
        %1001 = vmatpush1.xpose.msra.mxu0 %v970
        %1002 = vmatprep.subr.mxu0 0.0
        %1003 = vmatpush1.xpose.msra.mxu0 %v967
        %1004 = vmatprep.subr.mxu0 0.0
        %1005 = vmatpush2.xpose.msra.mxu0 %v857
        %1006 = vmatprep.subr.mxu0 0.0
        %1007 = vmatpush2.xpose.msra.mxu0 %v854
        %1008 = vmatprep.subr.mxu0 0.0
        %1009 = vmatpush2.xpose.msra.mxu0 %v851
        %1010 = vmatprep.subr.mxu0 0.0
        %1011 = vmatpush2.xpose.msra.mxu0 %v848
        %1012 = vmatprep.subr.mxu0 0.0
        %1013 = vmatpush2.xpose.msra.mxu0 %v845
        %1014 = vmatprep.subr.mxu0 0.0
        %1015 = vmatpush2.xpose.msra.mxu0 %v842
        %1016 = vmatprep.subr.mxu0 0.0
        %1017 = vmatpush2.xpose.msra.mxu0 %v839
        %1018 = vmatprep.subr.mxu0 0.0
        %1019 = vmatpush2.xpose.msra.mxu0 %v836
        %1020 = vmatprep.subr.mxu0 0.0
        %1021 = vmatpush2.xpose.msra.mxu0 %v833
        %1022 = vmatprep.subr.mxu0 0.0
        %1023 = vmatpush2.xpose.msra.mxu0 %v830
        %1024 = vmatprep.subr.mxu0 0.0
        %1025 = vmatpush2.xpose.msra.mxu0 %v827
        %1026 = vmatprep.subr.mxu0 0.0
        %1027 = vmatpush2.xpose.msra.mxu0 %v824
        %1028 = vmatprep.subr.mxu0 0.0
        %1029 = vmatpush2.xpose.msra.mxu0 %v821
        %1030 = vmatprep.subr.mxu0 0.0
        %1031 = vmatpush2.xpose.msra.mxu0 %v818
        %1032 = vmatprep.subr.mxu0 0.0
        %1033 = vmatpush2.xpose.msra.mxu0 %v815
        %1034 = vmatprep.subr.mxu0 0.0
        %1035 = vmatpush2.xpose.msra.mxu0 %v812
        %1036 = vmatprep.mubr.f32.mxu0 0.0
        %1037 = vmatmul.mubr.f32.gmra.mxu0 %v955
        %v1038 = vpop.f32.mrf.mxu0
        %v1039 = vadd.f32 %v932, %v1038
        %v1040 = vpop.f32.mrf.mxu0
        %v1041 = vadd.f32 %v934, %v1040
        %1042 = vmatprep.mubr.f32.mxu0 0.0
        %1043 = vmatmul.mubr.f32.gmra.mxu0 %v958
        %v1044 = vpop.f32.mrf.mxu0
        %v1045 = vadd.f32 %v938, %v1044
        %v1046 = vpop.f32.mrf.mxu0
        %v1047 = vadd.f32 %v940, %v1046
        %1048 = vmatprep.mubr.f32.mxu0 0.0
        %1049 = vmatmul.mubr.f32.gmra.mxu0 %v961
        %v1050 = vpop.f32.mrf.mxu0
        %v1051 = vadd.f32 %v944, %v1050
        %v1052 = vpop.f32.mrf.mxu0
        %v1053 = vadd.f32 %v946, %v1052
        %1054 = vmatprep.mubr.f32.mxu0 0.0
        %1055 = vmatmul.mubr.f32.gmra.mxu0 %v964
        %v1056 = vpop.f32.mrf.mxu0
        %v1057 = vadd.f32 %v950, %v1056
        %v1058 = vpop.f32.mrf.mxu0
        %v1059 = vadd.f32 %v952, %v1058
        %1060 = vdwg.mxu0
        %v1064 = vrot.slane %v247, 1
        %v1065 = vrot.slane %v248, 1
        %v1066 = vsel %vm298, %v1064, %v1065
        %v1067 = vrot.slane %v249, 1
        %v1068 = vsel %vm298, %v1065, %v1067
        %1069 = vrot.lane.b32.xlu0 %v1066, 4
        %v1070 = vpop.permute.xlu0 %1069
        %1071 = vrot.lane.b32.xlu0 %v1068, 4
        %v1072 = vpop.permute.xlu0 %1071
        %v1075 = vrot.slane %v247, 2
        %v1076 = vrot.slane %v248, 2
        %v1077 = vsel %vm475, %v1075, %v1076
        %v1078 = vrot.slane %v249, 2
        %v1079 = vsel %vm475, %v1076, %v1078
        %1080 = vrot.lane.b32.xlu0 %v1077, 8
        %v1081 = vpop.permute.xlu0 %1080
        %1082 = vrot.lane.b32.xlu0 %v1079, 8
        %v1083 = vpop.permute.xlu0 %1082
        %v1086 = vsel %vm652, %v247, %v1070
        %v1087 = vsel %vm652, %v248, %v1072
        %v1088 = vsel %vm685, %v1086, %v1081
        %v1089 = vsel %vm685, %v1087, %v1083
        %s1090 = scalar_lea.vmem %s1, 64
        %v1091 = vld [vmem:[%s1090] sm:$0xff]
        %v1092 = vld [vmem:[%s1090 + $0x8] sm:$0xff]
        %v1093 = vld [vmem:[%s1090 + $0x10] sm:$0xff]
        %v1094 = vld [vmem:[%s1090 + $0x18] sm:$0xff]
        %v1096 = vsel %vm756, %v1091, 0
        %v1099 = vsel %vm756, %v1092, 0
        %v1102 = vsel %vm756, %v1093, 0
        %v1105 = vsel %vm756, %v1094, 0
        %v1108 = vsel %vm756, %v1088, 0
        %v1111 = vsel %vm756, %v1089, 0
        %1113 = vmatprep.subr.mxu0 0.0
        %1114 = vmatpush1.xpose.msra.mxu0 %v821
        %1115 = vmatprep.subr.mxu0 0.0
        %1116 = vmatpush1.xpose.msra.mxu0 %v818
        %1117 = vmatprep.subr.mxu0 0.0
        %1118 = vmatpush1.xpose.msra.mxu0 %v815
        %1119 = vmatprep.subr.mxu0 0.0
        %1120 = vmatpush1.xpose.msra.mxu0 %v812
        %1121 = vmatprep.subr.mxu0 0.0
        %1122 = vmatpush1.xpose.msra.mxu0 %v809
        %1123 = vmatprep.subr.mxu0 0.0
        %1124 = vmatpush1.xpose.msra.mxu0 %v806
        %1125 = vmatprep.subr.mxu0 0.0
        %1126 = vmatpush1.xpose.msra.mxu0 %v803
        %1127 = vmatprep.subr.mxu0 0.0
        %1128 = vmatpush1.xpose.msra.mxu0 %v800
        %1129 = vmatprep.subr.mxu0 0.0
        %1130 = vmatpush1.xpose.msra.mxu0 %v797
        %1131 = vmatprep.subr.mxu0 0.0
        %1132 = vmatpush1.xpose.msra.mxu0 %v794
        %1133 = vmatprep.subr.mxu0 0.0
        %1134 = vmatpush1.xpose.msra.mxu0 %v791
        %1135 = vmatprep.subr.mxu0 0.0
        %1136 = vmatpush1.xpose.msra.mxu0 %v788
        %1137 = vmatprep.subr.mxu0 0.0
        %1138 = vmatpush1.xpose.msra.mxu0 %v785
        %1139 = vmatprep.subr.mxu0 0.0
        %1140 = vmatpush1.xpose.msra.mxu0 %v782
        %1141 = vmatprep.subr.mxu0 0.0
        %1142 = vmatpush1.xpose.msra.mxu0 %v779
        %1143 = vmatprep.subr.mxu0 0.0
        %1144 = vmatpush1.xpose.msra.mxu0 %v776
        %1145 = vmatprep.subr.mxu0 0.0
        %1146 = vmatpush2.xpose.msra.mxu0 %v1111
        %1147 = vmatprep.subr.mxu0 0.0
        %1148 = vmatpush2.xpose.msra.mxu0 %v1108
        %1149 = vmatprep.subr.mxu0 0.0
        %1150 = vmatpush2.xpose.msra.mxu0 %v863
        %1151 = vmatprep.subr.mxu0 0.0
        %1152 = vmatpush2.xpose.msra.mxu0 %v860
        %1153 = vmatprep.subr.mxu0 0.0
        %1154 = vmatpush2.xpose.msra.mxu0 %v857
        %1155 = vmatprep.subr.mxu0 0.0
        %1156 = vmatpush2.xpose.msra.mxu0 %v854
        %1157 = vmatprep.subr.mxu0 0.0
        %1158 = vmatpush2.xpose.msra.mxu0 %v851
        %1159 = vmatprep.subr.mxu0 0.0
        %1160 = vmatpush2.xpose.msra.mxu0 %v848
        %1161 = vmatprep.subr.mxu0 0.0
        %1162 = vmatpush2.xpose.msra.mxu0 %v845
        %1163 = vmatprep.subr.mxu0 0.0
        %1164 = vmatpush2.xpose.msra.mxu0 %v842
        %1165 = vmatprep.subr.mxu0 0.0
        %1166 = vmatpush2.xpose.msra.mxu0 %v839
        %1167 = vmatprep.subr.mxu0 0.0
        %1168 = vmatpush2.xpose.msra.mxu0 %v836
        %1169 = vmatprep.subr.mxu0 0.0
        %1170 = vmatpush2.xpose.msra.mxu0 %v833
        %1171 = vmatprep.subr.mxu0 0.0
        %1172 = vmatpush2.xpose.msra.mxu0 %v830
        %1173 = vmatprep.subr.mxu0 0.0
        %1174 = vmatpush2.xpose.msra.mxu0 %v827
        %1175 = vmatprep.subr.mxu0 0.0
        %1176 = vmatpush2.xpose.msra.mxu0 %v824
        %1177 = vmatprep.mubr.f32.mxu0 0.0
        %1178 = vmatmul.mubr.f32.gmra.mxu0 %v1096
        %v1179 = vpop.f32.mrf.mxu0
        %v1180 = vadd.f32 0.0, %v1179
        %v1181 = vpop.f32.mrf.mxu0
        %v1182 = vadd.f32 0.0, %v1181
        %1183 = vmatprep.mubr.f32.mxu0 0.0
        %1184 = vmatmul.mubr.f32.gmra.mxu0 %v1099
        %v1185 = vpop.f32.mrf.mxu0
        %v1186 = vadd.f32 0.0, %v1185
        %v1187 = vpop.f32.mrf.mxu0
        %v1188 = vadd.f32 0.0, %v1187
        %1189 = vmatprep.mubr.f32.mxu0 0.0
        %1190 = vmatmul.mubr.f32.gmra.mxu0 %v1102
        %v1191 = vpop.f32.mrf.mxu0
        %v1192 = vadd.f32 0.0, %v1191
        %v1193 = vpop.f32.mrf.mxu0
        %v1194 = vadd.f32 0.0, %v1193
        %1195 = vmatprep.mubr.f32.mxu0 0.0
        %1196 = vmatmul.mubr.f32.gmra.mxu0 %v1105
        %v1197 = vpop.f32.mrf.mxu0
        %v1198 = vadd.f32 0.0, %v1197
        %v1199 = vpop.f32.mrf.mxu0
        %v1200 = vadd.f32 0.0, %v1199
        %1201 = vdwg.mxu0
        %v1202 = vadd.f32 %v1039, %v1180
        %v1203 = vadd.f32 %v1041, %v1182
        %v1204 = vadd.f32 %v1045, %v1186
        %v1205 = vadd.f32 %v1047, %v1188
        %v1206 = vadd.f32 %v1051, %v1192
        %v1207 = vadd.f32 %v1053, %v1194
        %v1208 = vadd.f32 %v1057, %v1198
        %v1209 = vadd.f32 %v1059, %v1200
        %v1210 = vld [vmem:[%s2] sm:$0xff]
        %v1211 = vld [vmem:[%s2 + $0x8] sm:$0xff]
        %v1212 = vld [vmem:[%s2 + $0x10] sm:$0xff]
        %v1213 = vld [vmem:[%s2 + $0x18] sm:$0xff]
        %1215 = vset.pattern.permute.xlu0 0
        %1216 = vperm.xlu0 %1215, %v1210
        %v1217 = vpop.permute.xlu0 %1216
        %1220 = vset.pattern.permute.xlu0 0
        %1221 = vperm.xlu0 %1220, %v1211
        %v1222 = vpop.permute.xlu0 %1221
        %1225 = vset.pattern.permute.xlu0 0
        %1226 = vperm.xlu0 %1225, %v1212
        %v1227 = vpop.permute.xlu0 %1226
        %1230 = vset.pattern.permute.xlu0 0
        %1231 = vperm.xlu0 %1230, %v1213
        %v1232 = vpop.permute.xlu0 %1231
        %v1234 = vmul.f32 %v1202, %v1217
        %v1235 = vmul.f32 %v1203, %v1217
        %v1236 = vmul.f32 %v1204, %v1222
        %v1237 = vmul.f32 %v1205, %v1222
        %v1238 = vmul.f32 %v1206, %v1227
        %v1239 = vmul.f32 %v1207, %v1227
        %v1240 = vmul.f32 %v1208, %v1232
        %v1241 = vmul.f32 %v1209, %v1232
        %v1242 = vld [vmem:[%s3] sm:$0xff]
        %v1243 = vld [vmem:[%s3 + $0x8] sm:$0xff]
        %v1244 = vld [vmem:[%s3 + $0x10] sm:$0xff]
        %v1245 = vld [vmem:[%s3 + $0x18] sm:$0xff]
        %1247 = vset.pattern.permute.xlu0 0
        %1248 = vperm.xlu0 %1247, %v1242
        %v1249 = vpop.permute.xlu0 %1248
        %1252 = vset.pattern.permute.xlu0 0
        %1253 = vperm.xlu0 %1252, %v1243
        %v1254 = vpop.permute.xlu0 %1253
        %1257 = vset.pattern.permute.xlu0 0
        %1258 = vperm.xlu0 %1257, %v1244
        %v1259 = vpop.permute.xlu0 %1258
        %1262 = vset.pattern.permute.xlu0 0
        %1263 = vperm.xlu0 %1262, %v1245
        %v1264 = vpop.permute.xlu0 %1263
        %v1266 = vadd.f32 %v1234, %v1249
        %v1267 = vadd.f32 %v1235, %v1249
        %v1268 = vadd.f32 %v1236, %v1254
        %v1269 = vadd.f32 %v1237, %v1254
        %v1270 = vadd.f32 %v1238, %v1259
        %v1271 = vadd.f32 %v1239, %v1259
        %v1272 = vadd.f32 %v1240, %v1264
        %v1273 = vadd.f32 %v1241, %v1264
        %v1274 = vadd.f32 %v1266, 3.0
        %v1275 = vadd.f32 %v1267, 3.0
        %v1276 = vadd.f32 %v1268, 3.0
        %v1277 = vadd.f32 %v1269, 3.0
        %v1278 = vadd.f32 %v1270, 3.0
        %v1279 = vadd.f32 %v1271, 3.0
        %v1280 = vadd.f32 %v1272, 3.0
        %v1281 = vadd.f32 %v1273, 3.0
        %v1282 = vmax.f32 %v1274, 0.0
        %v1283 = vmax.f32 %v1275, 0.0
        %v1284 = vmax.f32 %v1276, 0.0
        %v1285 = vmax.f32 %v1277, 0.0
        %v1286 = vmax.f32 %v1278, 0.0
        %v1287 = vmax.f32 %v1279, 0.0
        %v1288 = vmax.f32 %v1280, 0.0
        %v1289 = vmax.f32 %v1281, 0.0
        %v1290 = vmin.f32 %v1282, 6.0
        %v1291 = vmin.f32 %v1283, 6.0
        %v1292 = vmin.f32 %v1284, 6.0
        %v1293 = vmin.f32 %v1285, 6.0
        %v1294 = vmin.f32 %v1286, 6.0
        %v1295 = vmin.f32 %v1287, 6.0
        %v1296 = vmin.f32 %v1288, 6.0
        %v1297 = vmin.f32 %v1289, 6.0
        %v1298 = vmul.f32 %v1266, %v1290
        %v1299 = vmul.f32 %v1267, %v1291
        %v1300 = vmul.f32 %v1268, %v1292
        %v1301 = vmul.f32 %v1269, %v1293
        %v1302 = vmul.f32 %v1270, %v1294
        %v1303 = vmul.f32 %v1271, %v1295
        %v1304 = vmul.f32 %v1272, %v1296
        %v1305 = vmul.f32 %v1273, %v1297
        %v1306 = vmul.f32 %v1298, 0.16666667
        %v1307 = vmul.f32 %v1299, 0.16666667
        %v1308 = vmul.f32 %v1300, 0.16666667
        %v1309 = vmul.f32 %v1301, 0.16666667
        %v1310 = vmul.f32 %v1302, 0.16666667
        %v1311 = vmul.f32 %v1303, 0.16666667
        %v1312 = vmul.f32 %v1304, 0.16666667
        %v1313 = vmul.f32 %v1305, 0.16666667
        %1314 = vst [vmem:[%s190] sm:$0xff] %v1306
        %1315 = vst [vmem:[%s190 + $0x8] sm:$0xff] %v1307
        %1316 = vst [vmem:[%s190 + $0x10] sm:$0xff] %v1308
        %1317 = vst [vmem:[%s190 + $0x18] sm:$0xff] %v1309
        %1318 = vst [vmem:[%s190 + $0x20] sm:$0xff] %v1310
        %1319 = vst [vmem:[%s190 + $0x28] sm:$0xff] %v1311
        %1320 = vst [vmem:[%s190 + $0x30] sm:$0xff] %v1312
        %1321 = vst [vmem:[%s190 + $0x38] sm:$0xff] %v1313
        %s1322 = sand.u32 %s115, 1
        %s1323 = scalar_lea.sflag [#allocation3], %s1322
        %s1324 = sand.u32 %s115, 1
        %s1325 = smul.addr %s1324, 64
        %s1326 = scalar_lea.vmem [#allocation2], %s1325
        // Predicated region
        $region37: #{tpu_custom_call.1} parent=35 // pred_check
          %p1327 = pneg %p125
        $region38: #{tpu_custom_call.1} parent=35 // pred_check_branch
          %1329 = sbr.rel (%p1327) target = $region40
        $region39: #{tpu_custom_call.1} parent=35 // pred_region
          %s1331 = ssub.s32 1024, 1024
          %1332 = vsyncadd %s1323, %s1331
          %s1333 = smul.addr %s18, 8
          %s1334 = smul.addr %s1333, 128
          %s1335 = scalar_lea.hbm %s4, %s1334
          %s1336 = sshll.u32 %s1326, 4
          %s1337 = int_to_ptr.vmem [resolvable:$true] %s1336
          %1342 = dma.vmem_to_hbm [thread:$0]  %s1337, 1024, %s1335, %s1323, 256, 256, 16
        $region40: #{tpu_custom_call.1} parent=35 // pred_fallthru
          _
      $region36: #{tpu_custom_call.1} parent=5 // pred_fallthru
        _
      %p1343 = scmp.le.s32.totalorder 2, %s13
      // Predicated region
      $region41: #{tpu_custom_call.1} parent=5 // pred_check
        %p1344 = pneg %p1343
      $region42: #{tpu_custom_call.1} parent=5 // pred_check_branch
        %1346 = sbr.rel (%p1344) target = $region44
      $region43: #{tpu_custom_call.1} parent=5 // pred_region
        %s1347 = ssub.s32 %s13, 2
        // Predicated region
        $region45: #{tpu_custom_call.1} parent=43 // pred_check
          %p1348 = pneg %p131
        $region46: #{tpu_custom_call.1} parent=43 // pred_check_branch
          %1350 = sbr.rel (%p1348) target = $region48
        $region47: #{tpu_custom_call.1} parent=43 // pred_region
          %s1351 = sand.u32 %s116, 1
          %s1352 = scalar_lea.sflag [#allocation3], %s1351
          %s1353 = sand.u32 %s116, 1
          %s1354 = smul.addr %s1353, 64
          %s1355 = scalar_lea.vmem [#allocation2], %s1354
          %1356 = dma.done %s1352, 1024
        $region48: #{tpu_custom_call.1} parent=43 // pred_fallthru
          _
      $region44: #{tpu_custom_call.1} parent=5 // pred_fallthru
        _
    $region6: #{tpu_custom_call.1} parent=1 // loop_footer
      %s17 = sadd.s32 1, %s13
    $region7: #{tpu_custom_call.1} parent=1 // loop_footer_branch
      %12 = sbr.rel target = $region3
    $region8: #{tpu_custom_call.1} parent=1 // loop_exit
      _
    %1357 = vsyncpa [#allocation3], 1
    %s1358 = scalar_lea.sflag [#allocation3], 1
    %1359 = vsyncpa %s1358, 1

</llo_original>
